<compile_context>
chip_gen: v7x
topology: tpu7x:2x2x1
jax: 0.10.0
libtpu: 0.0.40
codegen_flags: <defaults>
</compile_context>

<pallas_src>
import functools

import jax
import jax.numpy as jnp
from jax.experimental import pallas as pl
from jax.experimental.pallas import tpu as pltpu


def _dgm_cell_kernel(s_ref, x_ref, w_s_ref, w_x_ref, b_ref, w7_ref, out_ref, *, M):
    """One batch tile of the DGM cell.

    s_ref   : (bt, M)       previous state tile
    x_ref   : (bt, dim)     input tile
    w_s_ref : (M, 4M)       [w1|w3|w5|0] state projection (bf16 or f32)
    w_x_ref : (dim, 4M)     [w2|w4|w6|w8] input projection (bf16 or f32)
    b_ref   : (1, 4M)       fused biases [b1|b3|b5|b7] (f32)
    w7_ref  : (M, M)        H-path state weight (bf16 or f32)
    out_ref : (bt, M)       new state
    """
    mxu_dtype = w_s_ref.dtype

    s = s_ref[...].astype(jnp.float32)          # keep f32 for the s*Z residual
    x = x_ref[...]

    # Fused Z/G/R/(x@w8) projection: main MXU dot at K = M (128-aligned),
    # plus a tiny K = dim dot for the input path.  f32 accumulation.
    pre = jnp.dot(s.astype(mxu_dtype), w_s_ref[...],
                  preferred_element_type=jnp.float32)
    pre = pre + jnp.dot(x.astype(mxu_dtype), w_x_ref[...],
                        preferred_element_type=jnp.float32)
    pre = pre + b_ref[...].astype(jnp.float32)                   # (bt, 4M)

    Z = jnp.tanh(pre[:, 0 * M:1 * M])
    G = jnp.tanh(pre[:, 1 * M:2 * M])
    R = jnp.tanh(pre[:, 2 * M:3 * M])

    # H path: (s*R) @ w7 on the MXU; x @ w8 + b7 already sits in pre[:, 3M:4M].
    h_pre = jnp.dot((s * R).astype(mxu_dtype), w7_ref[...],
                    preferred_element_type=jnp.float32) + pre[:, 3 * M:4 * M]
    H = jnp.tanh(h_pre)

    new_state = (1.0 - G) * H + s * Z
    out_ref[...] = new_state.astype(out_ref.dtype)


def fuse_params(p, M, dim, mxu_dtype=jnp.bfloat16):
    """Fold the 8 Linear layers into the fused operands the kernel expects.

    Do this once per set of weights (not per forward call).
    """
    zeros = jnp.zeros((M, M), p["w1"].dtype)
    w_s = jnp.concatenate([p["w1"], p["w3"], p["w5"], zeros],
                          axis=1).astype(mxu_dtype)                     # (M,   4M)
    w_x = jnp.concatenate([p["w2"], p["w4"], p["w6"], p["w8"]],
                          axis=1).astype(mxu_dtype)                     # (dim, 4M)
    b_big = jnp.concatenate([p["b1"], p["b3"], p["b5"], p["b7"]],
                            axis=1).astype(jnp.float32)                 # (1,   4M)
    w7 = p["w7"].astype(mxu_dtype)                                      # (M,   M)
    return {"w_s": w_s, "w_x": w_x, "b_big": b_big, "w7": w7}


def _pick_block_b(B):
    """Largest multiple-of-8 divisor of B <= 1024, preferring >= 2 grid steps.

    Big tiles amortize the ~0.35 us/step overhead (mem-bound roofline ~85% at
    512-1024 rows vs ~63% at 256); >= 2 steps lets the "parallel" batch axis
    be sharded across both v7x TensorCores.
    """
    if B % 8 != 0:
        return B                       # full-extent block is always legal
    divs = [d for d in range(8, B + 1, 8) if B % d == 0]
    cands = [d for d in divs if d <= 1024] or [B]
    two_step = [d for d in cands if B // d >= 2]
    return max(two_step) if two_step else max(cands)


def dgm_cell(inputs, state, fused, *, block_b=None):
    """Run the fused DGM cell. `fused` comes from fuse_params()."""
    B, M = state.shape
    Bx, dim = inputs.shape
    assert Bx == B
    w_s, w_x, b_big, w7 = fused["w_s"], fused["w_x"], fused["b_big"], fused["w7"]
    assert w_s.shape == (M, 4 * M)
    assert w_x.shape == (dim, 4 * M)
    assert b_big.shape == (1, 4 * M)
    assert w7.shape == (M, M)

    if block_b is None:
        block_b = _pick_block_b(B)
    if B % block_b != 0 or block_b % 8 != 0:
        block_b = B                    # full-extent fallback, always legal
    grid = (B // block_b,)

    itemsize = lambda a: a.size * a.dtype.itemsize

    # Weight operands are VMEM-resident across grid steps (constant index_map).
    # For large M single-buffer them so they do not eat 2x VMEM on v7x.
    single_buffer_weights = M >= 512
    if single_buffer_weights:
        wspec = lambda shape: pl.BlockSpec(shape, lambda i: (0, 0),
                                           pipeline_mode=pl.Buffered(1))
    else:
        wspec = lambda shape: pl.BlockSpec(shape, lambda i: (0, 0))

    # Rough VMEM footprint: weights (+bias) x buffer count, activations/output
    # double-buffered.  Only raise the scoped limit if we actually need it.
    weight_bufs = 1 if single_buffer_weights else 2
    vmem_bytes = (weight_bufs * (itemsize(w_s) + itemsize(w_x) + itemsize(b_big)
                                 + itemsize(w7))
                  + 2 * block_b * (M * state.dtype.itemsize
                                   + dim * inputs.dtype.itemsize
                                   + M * state.dtype.itemsize))
    compiler_kwargs = dict(dimension_semantics=("parallel",))
    if vmem_bytes > 28 * 1024 * 1024:
        compiler_kwargs["vmem_limit_bytes"] = min(int(vmem_bytes * 1.25),
                                                  64 * 1024 * 1024)

    cost = pl.CostEstimate(
        flops=2 * B * M * 4 * M + 2 * B * dim * 4 * M + 2 * B * M * M,
        transcendentals=4 * B * M,
        bytes_accessed=itemsize(state) + itemsize(inputs) + itemsize(w_s)
        + itemsize(w_x) + itemsize(b_big) + itemsize(w7)
        + B * M * state.dtype.itemsize,
    )

    kernel = functools.partial(_dgm_cell_kernel, M=M)

    return pl.pallas_call(
        kernel,
        out_shape=jax.ShapeDtypeStruct((B, M), state.dtype),
        grid=grid,
        in_specs=[
            pl.BlockSpec((block_b, M), lambda i: (i, 0)),      # state: tiled over B
            pl.BlockSpec((block_b, dim), lambda i: (i, 0)),    # inputs: tiled over B
            wspec((M, 4 * M)),                                 # weights: VMEM-resident
            wspec((dim, 4 * M)),
            wspec((1, 4 * M)),
            wspec((M, M)),
        ],
        out_specs=pl.BlockSpec((block_b, M), lambda i: (i, 0)),
        compiler_params=pltpu.CompilerParams(**compiler_kwargs),
        cost_estimate=cost,
    )(state, inputs, w_s, w_x, b_big, w7)
    # TODO(synk): when this cell is stacked over multiple DGM layers/timesteps,
    # fuse the layer loop into the kernel (leading "arbitrary" grid axis over
    # layers, stream per-layer fused weights via the index_map, carry `state`
    # in a VMEM scratch initialized via pl.when) so `state` never round-trips
    # through HBM between layers.
    # TODO(synk): for production M >= ~1024 on v7x, additionally tile the 4M
    # output/feature axis instead of keeping whole weight slabs resident.


def init_params(key, M, dim, dtype=jnp.float32):
    """Deterministic synthetic init matching torch.nn.Linear shapes.

    L1,L3,L5,L7: Linear(M, M)          -> weight stored as (M, M), bias (1, M)
    L2,L4,L6,L8: Linear(dim, M, False) -> weight stored as (dim, M), no bias
    Weights are stored pre-transposed to (in_features, out_features).
    """
    keys = jax.random.split(key, 12)
    p = {}
    scale_m = 1.0 / jnp.sqrt(M)
    for i, name in enumerate(["1", "3", "5", "7"]):
        p[f"w{name}"] = jax.random.uniform(
            keys[i], (M, M), dtype, minval=-scale_m, maxval=scale_m)
        p[f"b{name}"] = jax.random.uniform(
            keys[4 + i], (1, M), dtype, minval=-scale_m, maxval=scale_m)
    scale_d = 1.0 / jnp.sqrt(dim)
    for i, name in enumerate(["2", "4", "6", "8"]):
        p[f"w{name}"] = jax.random.uniform(
            keys[8 + i], (dim, M), dtype, minval=-scale_d, maxval=scale_d)
    return p


def dgm_cell_ref(inputs, state, p):
    """Pure-JAX (f32) reference for correctness checking."""
    A1 = jnp.tanh
    A2 = jnp.tanh
    Z = A1(state @ p["w1"] + p["b1"] + inputs @ p["w2"])
    G = A1(state @ p["w3"] + p["b3"] + inputs @ p["w4"])
    R = A1(state @ p["w5"] + p["b5"] + inputs @ p["w6"])
    H = A2((state * R) @ p["w7"] + p["b7"] + inputs @ p["w8"])
    return (1.0 - G) * H + state * Z


if __name__ == "__main__":
    key = jax.random.PRNGKey(0)
    k_in, k_st, k_p = jax.random.split(key, 3)

    B, M, dim = 64, 128, 8
    inputs = jax.random.normal(k_in, (B, dim), jnp.float32)
    state = jax.random.normal(k_st, (B, M), jnp.float32)
    params = init_params(k_p, M, dim)

    ref = dgm_cell_ref(inputs, state, params)

    # 1) f32 MXU path, auto block_b (>= 2 grid steps): tight semantic check.
    fused_f32 = fuse_params(params, M, dim, mxu_dtype=jnp.float32)
    out_f32 = jax.block_until_ready(dgm_cell(inputs, state, fused_f32))
    assert out_f32.shape == (B, M)
    assert jnp.allclose(out_f32, ref, atol=1e-4, rtol=1e-4), "f32 mismatch vs reference"

    # 1b) explicit small batch tile (exercises multi-step grid path).
    out_f32_b = jax.block_until_ready(dgm_cell(inputs, state, fused_f32, block_b=16))
    assert jnp.allclose(out_f32_b, ref, atol=1e-4, rtol=1e-4), "tiled f32 mismatch"

    # 2) bf16-weight fast path (production config): f32 accumulation, looser tol.
    #    Note: activations fed to the MXU are also cast to bf16 in-kernel.
    fused_bf16 = fuse_params(params, M, dim, mxu_dtype=jnp.bfloat16)
    out_bf16 = jax.block_until_ready(dgm_cell(inputs, state, fused_bf16))
    assert out_bf16.shape == (B, M)
    assert jnp.allclose(out_bf16, ref, atol=3e-2, rtol=3e-2), "bf16 mismatch vs reference"

    print("KERNEL_OK")
</pallas_src>

<mosaic_0001>
module attributes {stable_mosaic.version = 11 : i64} {
  func.func @_dgm_cell_kernel(%arg0: i32, %arg1: memref<32x128xf32, #tpu.memory_space<vmem>>, %arg2: memref<32x8xf32, #tpu.memory_space<vmem>>, %arg3: memref<128x512xf32, #tpu.memory_space<vmem>>, %arg4: memref<8x512xf32, #tpu.memory_space<vmem>>, %arg5: memref<1x512xf32, #tpu.memory_space<vmem>>, %arg6: memref<128x128xf32, #tpu.memory_space<vmem>>, %arg7: memref<32x128xf32, #tpu.memory_space<vmem>>) attributes {dimension_semantics = [#tpu.dimension_semantics<parallel>], iteration_bounds = array<i64: 2>, scalar_prefetch = 0 : i64, scratch_operands = 0 : i64, tpu.core_type = #tpu.core_type<tc>, window_params = [{transform_indices = @transform_0, window_bounds = array<i64: 32, 128>}, {transform_indices = @transform_1, window_bounds = array<i64: 32, 8>}, {pipeline_mode = #tpu.pipeline_mode<synchronous>, transform_indices = @transform_2, window_bounds = array<i64: 128, 512>}, {pipeline_mode = #tpu.pipeline_mode<synchronous>, transform_indices = @transform_3, window_bounds = array<i64: 8, 512>}, {pipeline_mode = #tpu.pipeline_mode<synchronous>, transform_indices = @transform_4, window_bounds = array<i64: 1, 512>}, {pipeline_mode = #tpu.pipeline_mode<synchronous>, transform_indices = @transform_5, window_bounds = array<i64: 128, 128>}, {transform_indices = @transform_6, window_bounds = array<i64: 32, 128>}]} {
    %c0 = arith.constant 0 : index
    %c0_0 = arith.constant 0 : index
    %0 = vector.load %arg1[%c0, %c0_0] : memref<32x128xf32, #tpu.memory_space<vmem>>, vector<32x128xf32>
    %c0_1 = arith.constant 0 : index
    %c0_2 = arith.constant 0 : index
    %1 = vector.load %arg2[%c0_1, %c0_2] : memref<32x8xf32, #tpu.memory_space<vmem>>, vector<32x8xf32>
    %c0_3 = arith.constant 0 : index
    %c0_4 = arith.constant 0 : index
    %2 = vector.load %arg3[%c0_3, %c0_4] : memref<128x512xf32, #tpu.memory_space<vmem>>, vector<128x512xf32>
    %cst = arith.constant dense<0.000000e+00> : vector<32x512xf32>
    %3 = tpu.matmul %0, %2, %cst {dimension_numbers = #tpu.dot_dimension_numbers<[1], [0], [0], [1], [0, 0, 1, 1], [], []>} : vector<32x128xf32>, vector<128x512xf32>, vector<32x512xf32> -> vector<32x512xf32>
    %c0_5 = arith.constant 0 : index
    %c0_6 = arith.constant 0 : index
    %4 = vector.load %arg4[%c0_5, %c0_6] : memref<8x512xf32, #tpu.memory_space<vmem>>, vector<8x512xf32>
    %cst_7 = arith.constant dense<0.000000e+00> : vector<32x512xf32>
    %5 = tpu.matmul %1, %4, %cst_7 {dimension_numbers = #tpu.dot_dimension_numbers<[1], [0], [0], [1], [0, 0, 1, 1], [], []>} : vector<32x8xf32>, vector<8x512xf32>, vector<32x512xf32> -> vector<32x512xf32>
    %6 = arith.addf %3, %5 : vector<32x512xf32>
    %c0_8 = arith.constant 0 : index
    %c0_9 = arith.constant 0 : index
    %7 = vector.load %arg5[%c0_8, %c0_9] : memref<1x512xf32, #tpu.memory_space<vmem>>, vector<1x512xf32>
    %8 = vector.broadcast %7 : vector<1x512xf32> to vector<32x512xf32>
    %9 = arith.addf %6, %8 : vector<32x512xf32>
    %10 = vector.extract_strided_slice %9 {offsets = [0, 0], sizes = [32, 128], strides = [1, 1]} : vector<32x512xf32> to vector<32x128xf32>
    %11 = math.tanh %10 : vector<32x128xf32>
    %12 = vector.extract_strided_slice %9 {offsets = [0, 128], sizes = [32, 128], strides = [1, 1]} : vector<32x512xf32> to vector<32x128xf32>
    %13 = math.tanh %12 : vector<32x128xf32>
    %14 = vector.extract_strided_slice %9 {offsets = [0, 256], sizes = [32, 128], strides = [1, 1]} : vector<32x512xf32> to vector<32x128xf32>
    %15 = math.tanh %14 : vector<32x128xf32>
    %16 = arith.mulf %0, %15 : vector<32x128xf32>
    %c0_10 = arith.constant 0 : index
    %c0_11 = arith.constant 0 : index
    %17 = vector.load %arg6[%c0_10, %c0_11] : memref<128x128xf32, #tpu.memory_space<vmem>>, vector<128x128xf32>
    %cst_12 = arith.constant dense<0.000000e+00> : vector<32x128xf32>
    %18 = tpu.matmul %16, %17, %cst_12 {dimension_numbers = #tpu.dot_dimension_numbers<[1], [0], [0], [1], [0, 0, 1, 1], [], []>} : vector<32x128xf32>, vector<128x128xf32>, vector<32x128xf32> -> vector<32x128xf32>
    %19 = vector.extract_strided_slice %9 {offsets = [0, 384], sizes = [32, 128], strides = [1, 1]} : vector<32x512xf32> to vector<32x128xf32>
    %20 = arith.addf %18, %19 : vector<32x128xf32>
    %21 = math.tanh %20 : vector<32x128xf32>
    %cst_13 = arith.constant 1.000000e+00 : f32
    %22 = vector.broadcast %cst_13 : f32 to vector<32x128xf32>
    %23 = arith.subf %22, %13 : vector<32x128xf32>
    %24 = arith.mulf %23, %21 : vector<32x128xf32>
    %25 = arith.mulf %0, %11 : vector<32x128xf32>
    %26 = arith.addf %24, %25 : vector<32x128xf32>
    %c0_14 = arith.constant 0 : index
    %c0_15 = arith.constant 0 : index
    %27 = vector.load %arg7[%c0_14, %c0_15] : memref<32x128xf32, #tpu.memory_space<vmem>>, vector<32x128xf32>
    tpu.vector_store %arg7[%c0_14, %c0_15], %26 {strides = array<i32>} : memref<32x128xf32, #tpu.memory_space<vmem>>, vector<32x128xf32>,
    return
  }
  func.func @transform_0(%arg0: i32) -> (i32, i32) {
    %c0_i32 = arith.constant 0 : i32
    %c0_i32_0 = arith.constant 0 : i32
    return %arg0, %c0_i32 : i32, i32
  }
  func.func @transform_1(%arg0: i32) -> (i32, i32) {
    %c0_i32 = arith.constant 0 : i32
    %c0_i32_0 = arith.constant 0 : i32
    return %arg0, %c0_i32 : i32, i32
  }
  func.func @transform_2(%arg0: i32) -> (i32, i32) {
    %c0_i32 = arith.constant 0 : i32
    %c0_i32_0 = arith.constant 0 : i32
    %c0_i32_1 = arith.constant 0 : i32
    return %c0_i32, %c0_i32_0 : i32, i32
  }
  func.func @transform_3(%arg0: i32) -> (i32, i32) {
    %c0_i32 = arith.constant 0 : i32
    %c0_i32_0 = arith.constant 0 : i32
    %c0_i32_1 = arith.constant 0 : i32
    return %c0_i32, %c0_i32_0 : i32, i32
  }
  func.func @transform_4(%arg0: i32) -> (i32, i32) {
    %c0_i32 = arith.constant 0 : i32
    %c0_i32_0 = arith.constant 0 : i32
    %c0_i32_1 = arith.constant 0 : i32
    return %c0_i32, %c0_i32_0 : i32, i32
  }
  func.func @transform_5(%arg0: i32) -> (i32, i32) {
    %c0_i32 = arith.constant 0 : i32
    %c0_i32_0 = arith.constant 0 : i32
    %c0_i32_1 = arith.constant 0 : i32
    return %c0_i32, %c0_i32_0 : i32, i32
  }
  func.func @transform_6(%arg0: i32) -> (i32, i32) {
    %c0_i32 = arith.constant 0 : i32
    %c0_i32_0 = arith.constant 0 : i32
    return %arg0, %c0_i32 : i32, i32
  }
}

</mosaic_0001>

<llo_original>
// kernel: tpu_custom_call.1
$region0: #{tpu_custom_call.1}
  #allocation0 [shape = 'u32[]', space=smem, size = 0x4, offset = 0x4, fixed_abs, tag = 'smem constant byte address 0x4 - core index']
  #allocation1 [shape = 'u32[144,128]{1,0:T(1,128)}', space=vmem, size = 0x12000, scoped, tag = 'internal scratch']
  %s0 = inlined_call_operand.vmem [shape: f32[64,128], index: 0, kind: input, shape index: {}]
  %s1 = inlined_call_operand.vmem [shape: f32[64,8], index: 1, kind: input, shape index: {}]
  %s2 = inlined_call_operand.hbm [shape: f32[128,512], index: 2, kind: input, shape index: {}]
  %s3 = inlined_call_operand.hbm [shape: f32[8,512], index: 3, kind: input, shape index: {}]
  %s4 = inlined_call_operand.vmem [shape: f32[1,512], index: 4, kind: input, shape index: {}]
  %s5 = inlined_call_operand.hbm [shape: f32[128,128], index: 5, kind: input, shape index: {}]
  %s6 = inlined_call_operand.hbm [shape: f32[64,128], index: 6, kind: output, shape index: {}]
  %s7 = sld [smem:[#allocation0]]
  $region69: #{tpu_custom_call.1} parent=0
    _
  %s9 = ssub.s32 1, %s7
  %s10 = scalar_select 0, %s9, %s7
  $region1: #{tpu_custom_call.1} parent=0
    #allocation2 [shape = 'u8[262144]{0}', space=vmem, size = 0x40000, scoped, tag = 'input window, operand 2, single buffered']
    #allocation3 [shape = 's32[2]{0}', space=sflag, size = 0x8, scoped, tag = 'scoped memory for tpu_custom_call.1']
    #allocation4 [shape = 's32[2]{0}', space=sflag, size = 0x8, scoped, tag = 'scoped memory for tpu_custom_call.1']
    #allocation5 [shape = 'u8[16384]{0}', space=vmem, size = 0x4000, scoped, tag = 'input window, operand 3, single buffered']
    #allocation6 [shape = 's32[1]{0}', space=sflag, size = 0x4, scoped, tag = 'scoped memory for tpu_custom_call.1']
    #allocation7 [shape = 'u8[65536]{0}', space=vmem, size = 0x10000, scoped, tag = 'input window, operand 5, single buffered']
    #allocation8 [shape = 'u8[32768]{0}', space=vmem, size = 0x8000, scoped, tag = 'output window, operand 0']
    %11 = vsyncpa [#allocation3], 0
    %12 = vsyncpa [#allocation6], 0
    %13 = vsyncpa [#allocation4], 0
    %s14 = scalar_lea.sflag [#allocation4], 1
    %15 = vsyncpa %s14, 0
    loop: start=0, step=1, limit=4
    $region2: #{tpu_custom_call.1} parent=1 // loop_pre_header
      _
    $region3: #{tpu_custom_call.1} parent=1 // loop_header
      %s17 = sphi 0, %s21
      %p18 = scmp.ge.s32.totalorder %s17, 4
      %s27 = sphi 0, %s29
      %s30 = sphi 0, %s27
      %s31 = sphi 0, %s30
      %s47 = sphi 0, %s31
      %s53 = sphi 0, %s55
      %s56 = sphi 0, %s53
      %s57 = sphi 0, %s56
      %s73 = sphi 0, %s57
      %s77 = sphi 0, %s77
      %s79 = sphi 0, %s77
      %s80 = sphi 0, %s79
      %s94 = sphi 0, %s80
      %s98 = sphi 0, %s98
      %s100 = sphi 0, %s98
      %s101 = sphi 0, %s100
      %s115 = sphi 0, %s101
      %s119 = sphi 0, %s119
      %s121 = sphi 0, %s119
      %s122 = sphi 0, %s121
      %s136 = sphi 0, %s122
      %s140 = sphi 0, %s140
      %s142 = sphi 0, %s140
      %s143 = sphi 0, %s142
      %s157 = sphi 0, %s143
      %s163 = sphi 0, %s165
      %s166 = sphi 0, %s163
      %s167 = sphi 0, %s166
      %s183 = sphi 0, %s167
    $region4: #{tpu_custom_call.1} parent=1 // loop_header_branch
      %20 = sbr.rel (%p18) target = $region8
    $region5: #{tpu_custom_call.1} parent=1 // loop_body
      %s22 = ssub.s32 %s17, 1
      %s23 = ssub.s32 %s17, 2
      %s24 = sadd.s32 %s17, 1
      %s25 = ssub.s32 %s17, %s24
      %p26 = scmp.eq.s32.totalorder %s25, 0
      %s28 = sadd.s32 %s27, 1
      %s29 = scalar_select %p26, %s27, %s28
      %p32 = pneg %p26
      %p33 = scmp.eq.s32.totalorder %s17, 1
      %p34 = por %p32, %p33
      %p35 = scmp.ne.s32.totalorder %s27, %s30
      %p36 = scmp.eq.s32.totalorder %s17, 0
      %p37 = por %p35, %p36
      %p38 = scmp.ne.s32.totalorder %s27, %s30
      %p39 = scmp.eq.s32.totalorder %s22, 1
      %p40 = por %p38, %p39
      %p41 = scmp.ne.s32.totalorder %s30, %s31
      %p42 = scmp.eq.s32.totalorder %s22, 0
      %p43 = por %p41, %p42
      %p44 = scmp.ne.s32.totalorder %s30, %s31
      %p45 = scmp.eq.s32.totalorder %s23, 1
      %p46 = por %p44, %p45
      %p48 = scmp.ne.s32.totalorder %s31, %s47
      %p49 = scmp.eq.s32.totalorder %s23, 0
      %p50 = por %p48, %p49
      %s51 = ssub.s32 %s17, %s24
      %p52 = scmp.eq.s32.totalorder %s51, 0
      %s54 = sadd.s32 %s53, 1
      %s55 = scalar_select %p52, %s53, %s54
      %p58 = pneg %p52
      %p59 = scmp.eq.s32.totalorder %s17, 1
      %p60 = por %p58, %p59
      %p61 = scmp.ne.s32.totalorder %s53, %s56
      %p62 = scmp.eq.s32.totalorder %s17, 0
      %p63 = por %p61, %p62
      %p64 = scmp.ne.s32.totalorder %s53, %s56
      %p65 = scmp.eq.s32.totalorder %s22, 1
      %p66 = por %p64, %p65
      %p67 = scmp.ne.s32.totalorder %s56, %s57
      %p68 = scmp.eq.s32.totalorder %s22, 0
      %p69 = por %p67, %p68
      %p70 = scmp.ne.s32.totalorder %s56, %s57
      %p71 = scmp.eq.s32.totalorder %s23, 1
      %p72 = por %p70, %p71
      %p74 = scmp.ne.s32.totalorder %s57, %s73
      %p75 = scmp.eq.s32.totalorder %s23, 0
      %p76 = por %p74, %p75
      %s78 = sadd.s32 %s77, 1
      %p81 = scmp.eq.s32.totalorder %s17, 1
      %p82 = scmp.ne.s32.totalorder %s77, %s79
      %p83 = scmp.eq.s32.totalorder %s17, 0
      %p84 = por %p82, %p83
      %p85 = scmp.ne.s32.totalorder %s77, %s79
      %p86 = scmp.eq.s32.totalorder %s22, 1
      %p87 = por %p85, %p86
      %p88 = scmp.ne.s32.totalorder %s79, %s80
      %p89 = scmp.eq.s32.totalorder %s22, 0
      %p90 = por %p88, %p89
      %p91 = scmp.ne.s32.totalorder %s79, %s80
      %p92 = scmp.eq.s32.totalorder %s23, 1
      %p93 = por %p91, %p92
      %p95 = scmp.ne.s32.totalorder %s80, %s94
      %p96 = scmp.eq.s32.totalorder %s23, 0
      %p97 = por %p95, %p96
      %s99 = sadd.s32 %s98, 1
      %p102 = scmp.eq.s32.totalorder %s17, 1
      %p103 = scmp.ne.s32.totalorder %s98, %s100
      %p104 = scmp.eq.s32.totalorder %s17, 0
      %p105 = por %p103, %p104
      %p106 = scmp.ne.s32.totalorder %s98, %s100
      %p107 = scmp.eq.s32.totalorder %s22, 1
      %p108 = por %p106, %p107
      %p109 = scmp.ne.s32.totalorder %s100, %s101
      %p110 = scmp.eq.s32.totalorder %s22, 0
      %p111 = por %p109, %p110
      %p112 = scmp.ne.s32.totalorder %s100, %s101
      %p113 = scmp.eq.s32.totalorder %s23, 1
      %p114 = por %p112, %p113
      %p116 = scmp.ne.s32.totalorder %s101, %s115
      %p117 = scmp.eq.s32.totalorder %s23, 0
      %p118 = por %p116, %p117
      %s120 = sadd.s32 %s119, 1
      %p123 = scmp.eq.s32.totalorder %s17, 1
      %p124 = scmp.ne.s32.totalorder %s119, %s121
      %p125 = scmp.eq.s32.totalorder %s17, 0
      %p126 = por %p124, %p125
      %p127 = scmp.ne.s32.totalorder %s119, %s121
      %p128 = scmp.eq.s32.totalorder %s22, 1
      %p129 = por %p127, %p128
      %p130 = scmp.ne.s32.totalorder %s121, %s122
      %p131 = scmp.eq.s32.totalorder %s22, 0
      %p132 = por %p130, %p131
      %p133 = scmp.ne.s32.totalorder %s121, %s122
      %p134 = scmp.eq.s32.totalorder %s23, 1
      %p135 = por %p133, %p134
      %p137 = scmp.ne.s32.totalorder %s122, %s136
      %p138 = scmp.eq.s32.totalorder %s23, 0
      %p139 = por %p137, %p138
      %s141 = sadd.s32 %s140, 1
      %p144 = scmp.eq.s32.totalorder %s17, 1
      %p145 = scmp.ne.s32.totalorder %s140, %s142
      %p146 = scmp.eq.s32.totalorder %s17, 0
      %p147 = por %p145, %p146
      %p148 = scmp.ne.s32.totalorder %s140, %s142
      %p149 = scmp.eq.s32.totalorder %s22, 1
      %p150 = por %p148, %p149
      %p151 = scmp.ne.s32.totalorder %s142, %s143
      %p152 = scmp.eq.s32.totalorder %s22, 0
      %p153 = por %p151, %p152
      %p154 = scmp.ne.s32.totalorder %s142, %s143
      %p155 = scmp.eq.s32.totalorder %s23, 1
      %p156 = por %p154, %p155
      %p158 = scmp.ne.s32.totalorder %s143, %s157
      %p159 = scmp.eq.s32.totalorder %s23, 0
      %p160 = por %p158, %p159
      %s161 = ssub.s32 %s17, %s24
      %p162 = scmp.eq.s32.totalorder %s161, 0
      %s164 = sadd.s32 %s163, 1
      %s165 = scalar_select %p162, %s163, %s164
      %p168 = pneg %p162
      %p169 = scmp.eq.s32.totalorder %s17, 1
      %p170 = por %p168, %p169
      %p171 = scmp.ne.s32.totalorder %s163, %s166
      %p172 = scmp.eq.s32.totalorder %s17, 0
      %p173 = por %p171, %p172
      %p174 = scmp.ne.s32.totalorder %s163, %s166
      %p175 = scmp.eq.s32.totalorder %s22, 1
      %p176 = por %p174, %p175
      %p177 = scmp.ne.s32.totalorder %s166, %s167
      %p178 = scmp.eq.s32.totalorder %s22, 0
      %p179 = por %p177, %p178
      %p180 = scmp.ne.s32.totalorder %s166, %s167
      %p181 = scmp.eq.s32.totalorder %s23, 1
      %p182 = por %p180, %p181
      %p184 = scmp.ne.s32.totalorder %s167, %s183
      %p185 = scmp.eq.s32.totalorder %s23, 0
      %p186 = por %p184, %p185
      %p187 = scmp.le.s32.totalorder 1, %s17
      %p188 = scmp.lt.s32.totalorder %s17, 3
      %p189 = pnand %p187, %p188
      %p190 = pneg %p189
      // Predicated region
      $region9: #{tpu_custom_call.1} parent=5 // pred_check
        _
      $region10: #{tpu_custom_call.1} parent=5 // pred_check_branch
        %192 = sbr.rel (%p189) target = $region12
      $region11: #{tpu_custom_call.1} parent=5 // pred_region
        %s193 = ssub.s32 %s17, 1
        // Predicated region
        $region13: #{tpu_custom_call.1} parent=11 // pred_check
          %p194 = pneg %p90
        $region14: #{tpu_custom_call.1} parent=11 // pred_check_branch
          %196 = sbr.rel (%p194) target = $region16
        $region15: #{tpu_custom_call.1} parent=11 // pred_region
          %s198 = ssub.s32 8192, 8192
          %199 = vsyncadd [#allocation3], %s198
          %s200 = sshll.u32 [#allocation2], 4
          %s201 = int_to_ptr.vmem [resolvable:$true] %s200
          %206 = dma.hbm_to_vmem [thread:$0]  %s2, 8192, %s201, [#allocation3], 512, 512, 32
        $region16: #{tpu_custom_call.1} parent=11 // pred_fallthru
          _
        // Predicated region
        $region17: #{tpu_custom_call.1} parent=11 // pred_check
          %p207 = pneg %p111
        $region18: #{tpu_custom_call.1} parent=11 // pred_check_branch
          %209 = sbr.rel (%p207) target = $region20
        $region19: #{tpu_custom_call.1} parent=11 // pred_region
          %s211 = ssub.s32 512, 512
          %212 = vsyncadd [#allocation6], %s211
          %s214 = sshll.u32 [#allocation5], 4
          %s215 = int_to_ptr.vmem [resolvable:$true] %s214
          %217 = dma.hbm_to_vmem [thread:$0]  %s3, 512, %s215, [#allocation6]
        $region20: #{tpu_custom_call.1} parent=11 // pred_fallthru
          _
        // Predicated region
        $region21: #{tpu_custom_call.1} parent=11 // pred_check
          %p218 = pneg %p132
        $region22: #{tpu_custom_call.1} parent=11 // pred_check_branch
          %220 = sbr.rel (%p218) target = $region24
        $region23: #{tpu_custom_call.1} parent=11 // pred_region
          _
        $region24: #{tpu_custom_call.1} parent=11 // pred_fallthru
          _
        // Predicated region
        $region25: #{tpu_custom_call.1} parent=11 // pred_check
          %p221 = pneg %p153
        $region26: #{tpu_custom_call.1} parent=11 // pred_check_branch
          %223 = sbr.rel (%p221) target = $region28
        $region27: #{tpu_custom_call.1} parent=11 // pred_region
          %s225 = ssub.s32 2048, 2048
          %226 = vsyncadd [#allocation6], %s225
          %s227 = sshll.u32 [#allocation7], 4
          %s228 = int_to_ptr.vmem [resolvable:$true] %s227
          %233 = dma.hbm_to_vmem [thread:$0]  %s5, 2048, %s228, [#allocation6], 128, 128, 8
        $region28: #{tpu_custom_call.1} parent=11 // pred_fallthru
          _
      $region12: #{tpu_custom_call.1} parent=5 // pred_fallthru
        _
      %p234 = scmp.lt.s32.totalorder %s17, 2
      // Predicated region
      $region29: #{tpu_custom_call.1} parent=5 // pred_check
        %p235 = pneg %p234
      $region30: #{tpu_custom_call.1} parent=5 // pred_check_branch
        %237 = sbr.rel (%p235) target = $region32
      $region31: #{tpu_custom_call.1} parent=5 // pred_region
        // Predicated region
        $region33: #{tpu_custom_call.1} parent=31 // pred_check
          %p238 = pneg %p37
        $region34: #{tpu_custom_call.1} parent=31 // pred_check_branch
          %240 = sbr.rel (%p238) target = $region36
        $region35: #{tpu_custom_call.1} parent=31 // pred_region
          %s241 = smul.u32 4, %s17
          %p242 = scmp.lt.s32.totalorder %s241, 7
          %s243 = scalar_select %p242, %s241, 7
          %s244 = smul.addr %s243, 8
          %s245 = scalar_lea.vmem %s0, %s244
          %s246 = smul.u32 4, %s17
        $region36: #{tpu_custom_call.1} parent=31 // pred_fallthru
          _
        // Predicated region
        $region37: #{tpu_custom_call.1} parent=31 // pred_check
          %p247 = pneg %p63
        $region38: #{tpu_custom_call.1} parent=31 // pred_check_branch
          %249 = sbr.rel (%p247) target = $region40
        $region39: #{tpu_custom_call.1} parent=31 // pred_region
          %s250 = smul.u32 4, %s17
          %p251 = scmp.lt.s32.totalorder %s250, 7
          %s252 = scalar_select %p251, %s250, 7
          %s253 = smul.addr %s252, 8
          %s254 = scalar_lea.vmem %s1, %s253
          %s255 = smul.u32 4, %s17
        $region40: #{tpu_custom_call.1} parent=31 // pred_fallthru
          _
      $region32: #{tpu_custom_call.1} parent=5 // pred_fallthru
        _
      %p256 = scmp.le.s32.totalorder 1, %s17
      %p257 = scmp.lt.s32.totalorder %s17, 3
      %p258 = pnand %p256, %p257
      %p259 = pneg %p258
      // Predicated region
      $region41: #{tpu_custom_call.1} parent=5 // pred_check
        _
      $region42: #{tpu_custom_call.1} parent=5 // pred_check_branch
        %261 = sbr.rel (%p258) target = $region44
      $region43: #{tpu_custom_call.1} parent=5 // pred_region
        %s262 = ssub.s32 %s17, 1
        // Predicated region
        $region45: #{tpu_custom_call.1} parent=43 // pred_check
          %p263 = pneg %p90
        $region46: #{tpu_custom_call.1} parent=43 // pred_check_branch
          %265 = sbr.rel (%p263) target = $region48
        $region47: #{tpu_custom_call.1} parent=43 // pred_region
          %266 = dma.done [#allocation3], 8192
        $region48: #{tpu_custom_call.1} parent=43 // pred_fallthru
          _
        // Predicated region
        $region49: #{tpu_custom_call.1} parent=43 // pred_check
          %p267 = pneg %p111
        $region50: #{tpu_custom_call.1} parent=43 // pred_check_branch
          %269 = sbr.rel (%p267) target = $region52
        $region51: #{tpu_custom_call.1} parent=43 // pred_region
          %270 = dma.done [#allocation6], 512
        $region52: #{tpu_custom_call.1} parent=43 // pred_fallthru
          _
        // Predicated region
        $region53: #{tpu_custom_call.1} parent=43 // pred_check
          %p271 = pneg %p153
        $region54: #{tpu_custom_call.1} parent=43 // pred_check_branch
          %273 = sbr.rel (%p271) target = $region56
        $region55: #{tpu_custom_call.1} parent=43 // pred_region
          %274 = dma.done [#allocation6], 2048
        $region56: #{tpu_custom_call.1} parent=43 // pred_fallthru
          _
        %s275 = smul.u32 4, %s22
        %p276 = scmp.lt.s32.totalorder %s275, 7
        %s277 = scalar_select %p276, %s275, 7
        %s278 = smul.addr %s277, 8
        %s279 = scalar_lea.vmem %s0, %s278
        %p280 = pneg %p43
        %p281 = pneg %p40
        %s282 = smul.u32 4, %s22
        %p283 = scmp.lt.s32.totalorder %s282, 7
        %s284 = scalar_select %p283, %s282, 7
        %s285 = smul.addr %s284, 8
        %s286 = scalar_lea.vmem %s1, %s285
        %p287 = pneg %p69
        %p288 = pneg %p66
        %p289 = pneg %p90
        %p290 = pneg %p87
        %p291 = pneg %p111
        %p292 = pneg %p108
        %p293 = pneg %p132
        %p294 = pneg %p129
        %p295 = pneg %p153
        %p296 = pneg %p150
        %p297 = pneg %p179
        %p298 = pneg %p176
        %s299 = sand.u32 %s166, 1
        %s300 = scalar_lea.sflag [#allocation4], %s299
        %s301 = sand.u32 %s166, 1
        %s302 = smul.addr %s301, 32
        %s303 = scalar_lea.vmem [#allocation8], %s302
        %s304 = smul.u32 4, %s22
        %p305 = scmp.lt.s32.totalorder %s304, 7
        %s306 = scalar_select %p305, %s304, 7
        %s307 = smul.addr %s306, 8
        %s308 = scalar_lea.vmem %s0, %s307
        %s309 = smul.u32 4, %s22
        %s310 = smul.u32 4, %s22
        %p311 = scmp.lt.s32.totalorder %s310, 7
        %s312 = scalar_select %p311, %s310, 7
        %s313 = smul.addr %s312, 8
        %s314 = scalar_lea.vmem %s1, %s313
        %s315 = smul.u32 4, %s22
        %s316 = smul.u32 4, %s22
        %v317 = vld [vmem:[%s308] sm:$0xff]
        %v318 = vld [vmem:[%s308 + $0x8] sm:$0xff]
        %v319 = vld [vmem:[%s308 + $0x10] sm:$0xff]
        %v320 = vld [vmem:[%s308 + $0x18] sm:$0xff]
        %v321 = vld [vmem:[%s314] sm:$0xff]
        %v322 = vld [vmem:[%s314 + $0x8] sm:$0xff]
        %v323 = vld [vmem:[%s314 + $0x10] sm:$0xff]
        %v324 = vld [vmem:[%s314 + $0x18] sm:$0xff]
        %v325 = vld [vmem:[#allocation2] sm:$0xff]
        %v326 = vld [vmem:[#allocation2 + $0x8] sm:$0xff]
        %v327 = vld [vmem:[#allocation2 + $0x10] sm:$0xff]
        %v328 = vld [vmem:[#allocation2 + $0x18] sm:$0xff]
        %v329 = vld [vmem:[#allocation2 + $0x20] sm:$0xff]
        %v330 = vld [vmem:[#allocation2 + $0x28] sm:$0xff]
        %v331 = vld [vmem:[#allocation2 + $0x30] sm:$0xff]
        %v332 = vld [vmem:[#allocation2 + $0x38] sm:$0xff]
        %v333 = vld [vmem:[#allocation2 + $0x40] sm:$0xff]
        %v334 = vld [vmem:[#allocation2 + $0x48] sm:$0xff]
        %v335 = vld [vmem:[#allocation2 + $0x50] sm:$0xff]
        %v336 = vld [vmem:[#allocation2 + $0x58] sm:$0xff]
        %v337 = vld [vmem:[#allocation2 + $0x60] sm:$0xff]
        %v338 = vld [vmem:[#allocation2 + $0x68] sm:$0xff]
        %v339 = vld [vmem:[#allocation2 + $0x70] sm:$0xff]
        %v340 = vld [vmem:[#allocation2 + $0x78] sm:$0xff]
        %v341 = vld [vmem:[#allocation2 + $0x80] sm:$0xff]
        %v342 = vld [vmem:[#allocation2 + $0x88] sm:$0xff]
        %v343 = vld [vmem:[#allocation2 + $0x90] sm:$0xff]
        %v344 = vld [vmem:[#allocation2 + $0x98] sm:$0xff]
        %v345 = vld [vmem:[#allocation2 + $0xa0] sm:$0xff]
        %v346 = vld [vmem:[#allocation2 + $0xa8] sm:$0xff]
        %v347 = vld [vmem:[#allocation2 + $0xb0] sm:$0xff]
        %v348 = vld [vmem:[#allocation2 + $0xb8] sm:$0xff]
        %v349 = vld [vmem:[#allocation2 + $0xc0] sm:$0xff]
        %v350 = vld [vmem:[#allocation2 + $0xc8] sm:$0xff]
        %v351 = vld [vmem:[#allocation2 + $0xd0] sm:$0xff]
        %v352 = vld [vmem:[#allocation2 + $0xd8] sm:$0xff]
        %v353 = vld [vmem:[#allocation2 + $0xe0] sm:$0xff]
        %v354 = vld [vmem:[#allocation2 + $0xe8] sm:$0xff]
        %v355 = vld [vmem:[#allocation2 + $0xf0] sm:$0xff]
        %v356 = vld [vmem:[#allocation2 + $0xf8] sm:$0xff]
        %v357 = vld [vmem:[#allocation2 + $0x100] sm:$0xff]
        %v358 = vld [vmem:[#allocation2 + $0x108] sm:$0xff]
        %v359 = vld [vmem:[#allocation2 + $0x110] sm:$0xff]
        %v360 = vld [vmem:[#allocation2 + $0x118] sm:$0xff]
        %v361 = vld [vmem:[#allocation2 + $0x120] sm:$0xff]
        %v362 = vld [vmem:[#allocation2 + $0x128] sm:$0xff]
        %v363 = vld [vmem:[#allocation2 + $0x130] sm:$0xff]
        %v364 = vld [vmem:[#allocation2 + $0x138] sm:$0xff]
        %v365 = vld [vmem:[#allocation2 + $0x140] sm:$0xff]
        %v366 = vld [vmem:[#allocation2 + $0x148] sm:$0xff]
        %v367 = vld [vmem:[#allocation2 + $0x150] sm:$0xff]
        %v368 = vld [vmem:[#allocation2 + $0x158] sm:$0xff]
        %v369 = vld [vmem:[#allocation2 + $0x160] sm:$0xff]
        %v370 = vld [vmem:[#allocation2 + $0x168] sm:$0xff]
        %v371 = vld [vmem:[#allocation2 + $0x170] sm:$0xff]
        %v372 = vld [vmem:[#allocation2 + $0x178] sm:$0xff]
        %v373 = vld [vmem:[#allocation2 + $0x180] sm:$0xff]
        %v374 = vld [vmem:[#allocation2 + $0x188] sm:$0xff]
        %v375 = vld [vmem:[#allocation2 + $0x190] sm:$0xff]
        %v376 = vld [vmem:[#allocation2 + $0x198] sm:$0xff]
        %v377 = vld [vmem:[#allocation2 + $0x1a0] sm:$0xff]
        %v378 = vld [vmem:[#allocation2 + $0x1a8] sm:$0xff]
        %v379 = vld [vmem:[#allocation2 + $0x1b0] sm:$0xff]
        %v380 = vld [vmem:[#allocation2 + $0x1b8] sm:$0xff]
        %v381 = vld [vmem:[#allocation2 + $0x1c0] sm:$0xff]
        %v382 = vld [vmem:[#allocation2 + $0x1c8] sm:$0xff]
        %v383 = vld [vmem:[#allocation2 + $0x1d0] sm:$0xff]
        %v384 = vld [vmem:[#allocation2 + $0x1d8] sm:$0xff]
        %v385 = vld [vmem:[#allocation2 + $0x1e0] sm:$0xff]
        %v386 = vld [vmem:[#allocation2 + $0x1e8] sm:$0xff]
        %v387 = vld [vmem:[#allocation2 + $0x1f0] sm:$0xff]
        %v388 = vld [vmem:[#allocation2 + $0x1f8] sm:$0xff]
        %v389 = vld [vmem:[#allocation5] sm:$0xff]
        %v390 = vld [vmem:[#allocation5 + $0x8] sm:$0xff]
        %v391 = vld [vmem:[#allocation5 + $0x10] sm:$0xff]
        %v392 = vld [vmem:[#allocation5 + $0x18] sm:$0xff]
        %vm393 = vcmask 64512
        %v395 = vsel %vm393, %v321, 0
        %v398 = vsel %vm393, %v322, 0
        %v401 = vsel %vm393, %v323, 0
        %v404 = vsel %vm393, %v324, 0
        %406 = vmatprep.subr.mxu0 %v390
        %407 = vmatpush1.msra.mxu0 %v389
        %408 = vmatprep.subr.mxu0 0.0
        %409 = vmatpush1.msra.mxu0 0.0
        %410 = vmatprep.subr.mxu0 0.0
        %411 = vmatpush1.msra.mxu0 0.0
        %412 = vmatprep.subr.mxu0 0.0
        %413 = vmatpush1.msra.mxu0 0.0
        %414 = vmatprep.subr.mxu0 0.0
        %415 = vmatpush1.msra.mxu0 0.0
        %416 = vmatprep.subr.mxu0 0.0
        %417 = vmatpush1.msra.mxu0 0.0
        %418 = vmatprep.subr.mxu0 0.0
        %419 = vmatpush1.msra.mxu0 0.0
        %420 = vmatprep.subr.mxu0 0.0
        %421 = vmatpush1.msra.mxu0 0.0
        %422 = vmatprep.subr.mxu0 0.0
        %423 = vmatpush1.msra.mxu0 0.0
        %424 = vmatprep.subr.mxu0 0.0
        %425 = vmatpush1.msra.mxu0 0.0
        %426 = vmatprep.subr.mxu0 0.0
        %427 = vmatpush1.msra.mxu0 0.0
        %428 = vmatprep.subr.mxu0 0.0
        %429 = vmatpush1.msra.mxu0 0.0
        %430 = vmatprep.subr.mxu0 0.0
        %431 = vmatpush1.msra.mxu0 0.0
        %432 = vmatprep.subr.mxu0 0.0
        %433 = vmatpush1.msra.mxu0 0.0
        %434 = vmatprep.subr.mxu0 0.0
        %435 = vmatpush1.msra.mxu0 0.0
        %436 = vmatprep.subr.mxu0 0.0
        %437 = vmatpush1.msra.mxu0 0.0
        %438 = vmatprep.subr.mxu0 0.0
        %439 = vmatpush1.msra.mxu0 0.0
        %440 = vmatprep.subr.mxu0 0.0
        %441 = vmatpush1.msra.mxu0 0.0
        %442 = vmatprep.subr.mxu0 0.0
        %443 = vmatpush1.msra.mxu0 0.0
        %444 = vmatprep.subr.mxu0 0.0
        %445 = vmatpush1.msra.mxu0 0.0
        %446 = vmatprep.subr.mxu0 0.0
        %447 = vmatpush1.msra.mxu0 0.0
        %448 = vmatprep.subr.mxu0 0.0
        %449 = vmatpush1.msra.mxu0 0.0
        %450 = vmatprep.subr.mxu0 0.0
        %451 = vmatpush1.msra.mxu0 0.0
        %452 = vmatprep.subr.mxu0 0.0
        %453 = vmatpush1.msra.mxu0 0.0
        %454 = vmatprep.subr.mxu0 0.0
        %455 = vmatpush1.msra.mxu0 0.0
        %456 = vmatprep.subr.mxu0 0.0
        %457 = vmatpush1.msra.mxu0 0.0
        %458 = vmatprep.subr.mxu0 0.0
        %459 = vmatpush1.msra.mxu0 0.0
        %460 = vmatprep.subr.mxu0 0.0
        %461 = vmatpush1.msra.mxu0 0.0
        %462 = vmatprep.subr.mxu0 0.0
        %463 = vmatpush1.msra.mxu0 0.0
        %464 = vmatprep.subr.mxu0 0.0
        %465 = vmatpush1.msra.mxu0 0.0
        %466 = vmatprep.subr.mxu0 0.0
        %467 = vmatpush1.msra.mxu0 0.0
        %468 = vmatprep.subr.mxu0 0.0
        %469 = vmatpush1.msra.mxu0 0.0
        %470 = vmatprep.mubr.f32.mxu0 0.0
        %471 = vmatmul.mubr.f32.gmra.mrb[0].mxu0 %v395
        %v472 = vpop.f32.mrb[0].mxu0
        %v473 = vadd.f32 0.0, %v472
        %v474 = vpop.f32.mrb[0].mxu0
        %v475 = vadd.f32 0.0, %v474
        %476 = vmatprep.mubr.f32.mxu0 0.0
        %477 = vmatmul.mubr.f32.gmra.mrb[0].mxu0 %v398
        %v478 = vpop.f32.mrb[0].mxu0
        %v479 = vadd.f32 0.0, %v478
        %v480 = vpop.f32.mrb[0].mxu0
        %v481 = vadd.f32 0.0, %v480
        %482 = vmatprep.mubr.f32.mxu0 0.0
        %483 = vmatmul.mubr.f32.gmra.mrb[0].mxu0 %v401
        %v484 = vpop.f32.mrb[0].mxu0
        %v485 = vadd.f32 0.0, %v484
        %v486 = vpop.f32.mrb[0].mxu0
        %v487 = vadd.f32 0.0, %v486
        %488 = vmatprep.mubr.f32.mxu0 0.0
        %489 = vmatmul.mubr.f32.gmra.mrb[0].mxu0 %v404
        %v490 = vpop.f32.mrb[0].mxu0
        %v491 = vadd.f32 0.0, %v490
        %v492 = vpop.f32.mrb[0].mxu0
        %v493 = vadd.f32 0.0, %v492
        %494 = vdwg.mxu0
        %495 = vmatprep.subr.mxu0 %v392
        %496 = vmatpush1.msra.mxu0 %v391
        %497 = vmatprep.subr.mxu0 0.0
        %498 = vmatpush1.msra.mxu0 0.0
        %499 = vmatprep.subr.mxu0 0.0
        %500 = vmatpush1.msra.mxu0 0.0
        %501 = vmatprep.subr.mxu0 0.0
        %502 = vmatpush1.msra.mxu0 0.0
        %503 = vmatprep.subr.mxu0 0.0
        %504 = vmatpush1.msra.mxu0 0.0
        %505 = vmatprep.subr.mxu0 0.0
        %506 = vmatpush1.msra.mxu0 0.0
        %507 = vmatprep.subr.mxu0 0.0
        %508 = vmatpush1.msra.mxu0 0.0
        %509 = vmatprep.subr.mxu0 0.0
        %510 = vmatpush1.msra.mxu0 0.0
        %511 = vmatprep.subr.mxu0 0.0
        %512 = vmatpush1.msra.mxu0 0.0
        %513 = vmatprep.subr.mxu0 0.0
        %514 = vmatpush1.msra.mxu0 0.0
        %515 = vmatprep.subr.mxu0 0.0
        %516 = vmatpush1.msra.mxu0 0.0
        %517 = vmatprep.subr.mxu0 0.0
        %518 = vmatpush1.msra.mxu0 0.0
        %519 = vmatprep.subr.mxu0 0.0
        %520 = vmatpush1.msra.mxu0 0.0
        %521 = vmatprep.subr.mxu0 0.0
        %522 = vmatpush1.msra.mxu0 0.0
        %523 = vmatprep.subr.mxu0 0.0
        %524 = vmatpush1.msra.mxu0 0.0
        %525 = vmatprep.subr.mxu0 0.0
        %526 = vmatpush1.msra.mxu0 0.0
        %527 = vmatprep.subr.mxu0 0.0
        %528 = vmatpush1.msra.mxu0 0.0
        %529 = vmatprep.subr.mxu0 0.0
        %530 = vmatpush1.msra.mxu0 0.0
        %531 = vmatprep.subr.mxu0 0.0
        %532 = vmatpush1.msra.mxu0 0.0
        %533 = vmatprep.subr.mxu0 0.0
        %534 = vmatpush1.msra.mxu0 0.0
        %535 = vmatprep.subr.mxu0 0.0
        %536 = vmatpush1.msra.mxu0 0.0
        %537 = vmatprep.subr.mxu0 0.0
        %538 = vmatpush1.msra.mxu0 0.0
        %539 = vmatprep.subr.mxu0 0.0
        %540 = vmatpush1.msra.mxu0 0.0
        %541 = vmatprep.subr.mxu0 0.0
        %542 = vmatpush1.msra.mxu0 0.0
        %543 = vmatprep.subr.mxu0 0.0
        %544 = vmatpush1.msra.mxu0 0.0
        %545 = vmatprep.subr.mxu0 0.0
        %546 = vmatpush1.msra.mxu0 0.0
        %547 = vmatprep.subr.mxu0 0.0
        %548 = vmatpush1.msra.mxu0 0.0
        %549 = vmatprep.subr.mxu0 0.0
        %550 = vmatpush1.msra.mxu0 0.0
        %551 = vmatprep.subr.mxu0 0.0
        %552 = vmatpush1.msra.mxu0 0.0
        %553 = vmatprep.subr.mxu0 0.0
        %554 = vmatpush1.msra.mxu0 0.0
        %555 = vmatprep.subr.mxu0 0.0
        %556 = vmatpush1.msra.mxu0 0.0
        %557 = vmatprep.subr.mxu0 0.0
        %558 = vmatpush1.msra.mxu0 0.0
        %559 = vmatprep.mubr.f32.mxu0 0.0
        %560 = vmatmul.mubr.f32.gmra.mrb[0].mxu0 %v395
        %v561 = vpop.f32.mrb[0].mxu0
        %v562 = vadd.f32 0.0, %v561
        %v563 = vpop.f32.mrb[0].mxu0
        %v564 = vadd.f32 0.0, %v563
        %565 = vmatprep.mubr.f32.mxu0 0.0
        %566 = vmatmul.mubr.f32.gmra.mrb[0].mxu0 %v398
        %v567 = vpop.f32.mrb[0].mxu0
        %v568 = vadd.f32 0.0, %v567
        %v569 = vpop.f32.mrb[0].mxu0
        %v570 = vadd.f32 0.0, %v569
        %571 = vmatprep.mubr.f32.mxu0 0.0
        %572 = vmatmul.mubr.f32.gmra.mrb[0].mxu0 %v401
        %v573 = vpop.f32.mrb[0].mxu0
        %v574 = vadd.f32 0.0, %v573
        %v575 = vpop.f32.mrb[0].mxu0
        %v576 = vadd.f32 0.0, %v575
        %577 = vmatprep.mubr.f32.mxu0 0.0
        %578 = vmatmul.mubr.f32.gmra.mrb[0].mxu0 %v404
        %v579 = vpop.f32.mrb[0].mxu0
        %v580 = vadd.f32 0.0, %v579
        %v581 = vpop.f32.mrb[0].mxu0
        %v582 = vadd.f32 0.0, %v581
        %583 = vdwg.mxu0
        %584 = vmatprep.subr.mxu0 %v326
        %585 = vmatpush1.msra.mxu0 %v325
        %586 = vmatprep.subr.mxu0 %v330
        %587 = vmatpush1.msra.mxu0 %v329
        %588 = vmatprep.subr.mxu0 %v334
        %589 = vmatpush1.msra.mxu0 %v333
        %590 = vmatprep.subr.mxu0 %v338
        %591 = vmatpush1.msra.mxu0 %v337
        %592 = vmatprep.subr.mxu0 %v342
        %593 = vmatpush1.msra.mxu0 %v341
        %594 = vmatprep.subr.mxu0 %v346
        %595 = vmatpush1.msra.mxu0 %v345
        %596 = vmatprep.subr.mxu0 %v350
        %597 = vmatpush1.msra.mxu0 %v349
        %598 = vmatprep.subr.mxu0 %v354
        %599 = vmatpush1.msra.mxu0 %v353
        %600 = vmatprep.subr.mxu0 %v358
        %601 = vmatpush1.msra.mxu0 %v357
        %602 = vmatprep.subr.mxu0 %v362
        %603 = vmatpush1.msra.mxu0 %v361
        %604 = vmatprep.subr.mxu0 %v366
        %605 = vmatpush1.msra.mxu0 %v365
        %606 = vmatprep.subr.mxu0 %v370
        %607 = vmatpush1.msra.mxu0 %v369
        %608 = vmatprep.subr.mxu0 %v374
        %609 = vmatpush1.msra.mxu0 %v373
        %610 = vmatprep.subr.mxu0 %v378
        %611 = vmatpush1.msra.mxu0 %v377
        %612 = vmatprep.subr.mxu0 %v382
        %613 = vmatpush1.msra.mxu0 %v381
        %614 = vmatprep.subr.mxu0 %v386
        %615 = vmatpush1.msra.mxu0 %v385
        %616 = vmatprep.subr.mxu0 0.0
        %617 = vmatpush1.msra.mxu0 0.0
        %618 = vmatprep.subr.mxu0 0.0
        %619 = vmatpush1.msra.mxu0 0.0
        %620 = vmatprep.subr.mxu0 0.0
        %621 = vmatpush1.msra.mxu0 0.0
        %622 = vmatprep.subr.mxu0 0.0
        %623 = vmatpush1.msra.mxu0 0.0
        %624 = vmatprep.subr.mxu0 0.0
        %625 = vmatpush1.msra.mxu0 0.0
        %626 = vmatprep.subr.mxu0 0.0
        %627 = vmatpush1.msra.mxu0 0.0
        %628 = vmatprep.subr.mxu0 0.0
        %629 = vmatpush1.msra.mxu0 0.0
        %630 = vmatprep.subr.mxu0 0.0
        %631 = vmatpush1.msra.mxu0 0.0
        %632 = vmatprep.subr.mxu0 0.0
        %633 = vmatpush1.msra.mxu0 0.0
        %634 = vmatprep.subr.mxu0 0.0
        %635 = vmatpush1.msra.mxu0 0.0
        %636 = vmatprep.subr.mxu0 0.0
        %637 = vmatpush1.msra.mxu0 0.0
        %638 = vmatprep.subr.mxu0 0.0
        %639 = vmatpush1.msra.mxu0 0.0
        %640 = vmatprep.subr.mxu0 0.0
        %641 = vmatpush1.msra.mxu0 0.0
        %642 = vmatprep.subr.mxu0 0.0
        %643 = vmatpush1.msra.mxu0 0.0
        %644 = vmatprep.subr.mxu0 0.0
        %645 = vmatpush1.msra.mxu0 0.0
        %646 = vmatprep.subr.mxu0 0.0
        %647 = vmatpush1.msra.mxu0 0.0
        %648 = vmatprep.mubr.f32.mxu0 0.0
        %649 = vmatmul.mubr.f32.gmra.mrb[0].mxu0 %v317
        %v650 = vpop.f32.mrb[0].mxu0
        %v651 = vadd.f32 %v473, %v650
        %v652 = vpop.f32.mrb[0].mxu0
        %v653 = vadd.f32 %v475, %v652
        %654 = vmatprep.mubr.f32.mxu0 0.0
        %655 = vmatmul.mubr.f32.gmra.mrb[0].mxu0 %v318
        %v656 = vpop.f32.mrb[0].mxu0
        %v657 = vadd.f32 %v479, %v656
        %v658 = vpop.f32.mrb[0].mxu0
        %v659 = vadd.f32 %v481, %v658
        %660 = vmatprep.mubr.f32.mxu0 0.0
        %661 = vmatmul.mubr.f32.gmra.mrb[0].mxu0 %v319
        %v662 = vpop.f32.mrb[0].mxu0
        %v663 = vadd.f32 %v485, %v662
        %v664 = vpop.f32.mrb[0].mxu0
        %v665 = vadd.f32 %v487, %v664
        %666 = vmatprep.mubr.f32.mxu0 0.0
        %667 = vmatmul.mubr.f32.gmra.mrb[0].mxu0 %v320
        %v668 = vpop.f32.mrb[0].mxu0
        %v669 = vadd.f32 %v491, %v668
        %v670 = vpop.f32.mrb[0].mxu0
        %v671 = vadd.f32 %v493, %v670
        %672 = vdwg.mxu0
        %673 = vmatprep.subr.mxu0 %v328
        %674 = vmatpush1.msra.mxu0 %v327
        %675 = vmatprep.subr.mxu0 %v332
        %676 = vmatpush1.msra.mxu0 %v331
        %677 = vmatprep.subr.mxu0 %v336
        %678 = vmatpush1.msra.mxu0 %v335
        %679 = vmatprep.subr.mxu0 %v340
        %680 = vmatpush1.msra.mxu0 %v339
        %681 = vmatprep.subr.mxu0 %v344
        %682 = vmatpush1.msra.mxu0 %v343
        %683 = vmatprep.subr.mxu0 %v348
        %684 = vmatpush1.msra.mxu0 %v347
        %685 = vmatprep.subr.mxu0 %v352
        %686 = vmatpush1.msra.mxu0 %v351
        %687 = vmatprep.subr.mxu0 %v356
        %688 = vmatpush1.msra.mxu0 %v355
        %689 = vmatprep.subr.mxu0 %v360
        %690 = vmatpush1.msra.mxu0 %v359
        %691 = vmatprep.subr.mxu0 %v364
        %692 = vmatpush1.msra.mxu0 %v363
        %693 = vmatprep.subr.mxu0 %v368
        %694 = vmatpush1.msra.mxu0 %v367
        %695 = vmatprep.subr.mxu0 %v372
        %696 = vmatpush1.msra.mxu0 %v371
        %697 = vmatprep.subr.mxu0 %v376
        %698 = vmatpush1.msra.mxu0 %v375
        %699 = vmatprep.subr.mxu0 %v380
        %700 = vmatpush1.msra.mxu0 %v379
        %701 = vmatprep.subr.mxu0 %v384
        %702 = vmatpush1.msra.mxu0 %v383
        %703 = vmatprep.subr.mxu0 %v388
        %704 = vmatpush1.msra.mxu0 %v387
        %705 = vmatprep.subr.mxu0 0.0
        %706 = vmatpush1.msra.mxu0 0.0
        %707 = vmatprep.subr.mxu0 0.0
        %708 = vmatpush1.msra.mxu0 0.0
        %709 = vmatprep.subr.mxu0 0.0
        %710 = vmatpush1.msra.mxu0 0.0
        %711 = vmatprep.subr.mxu0 0.0
        %712 = vmatpush1.msra.mxu0 0.0
        %713 = vmatprep.subr.mxu0 0.0
        %714 = vmatpush1.msra.mxu0 0.0
        %715 = vmatprep.subr.mxu0 0.0
        %716 = vmatpush1.msra.mxu0 0.0
        %717 = vmatprep.subr.mxu0 0.0
        %718 = vmatpush1.msra.mxu0 0.0
        %719 = vmatprep.subr.mxu0 0.0
        %720 = vmatpush1.msra.mxu0 0.0
        %721 = vmatprep.subr.mxu0 0.0
        %722 = vmatpush1.msra.mxu0 0.0
        %723 = vmatprep.subr.mxu0 0.0
        %724 = vmatpush1.msra.mxu0 0.0
        %725 = vmatprep.subr.mxu0 0.0
        %726 = vmatpush1.msra.mxu0 0.0
        %727 = vmatprep.subr.mxu0 0.0
        %728 = vmatpush1.msra.mxu0 0.0
        %729 = vmatprep.subr.mxu0 0.0
        %730 = vmatpush1.msra.mxu0 0.0
        %731 = vmatprep.subr.mxu0 0.0
        %732 = vmatpush1.msra.mxu0 0.0
        %733 = vmatprep.subr.mxu0 0.0
        %734 = vmatpush1.msra.mxu0 0.0
        %735 = vmatprep.subr.mxu0 0.0
        %736 = vmatpush1.msra.mxu0 0.0
        %737 = vmatprep.mubr.f32.mxu0 0.0
        %738 = vmatmul.mubr.f32.gmra.mrb[0].mxu0 %v317
        %v739 = vpop.f32.mrb[0].mxu0
        %v740 = vadd.f32 %v562, %v739
        %v741 = vpop.f32.mrb[0].mxu0
        %v742 = vadd.f32 %v564, %v741
        %743 = vmatprep.mubr.f32.mxu0 0.0
        %744 = vmatmul.mubr.f32.gmra.mrb[0].mxu0 %v318
        %v745 = vpop.f32.mrb[0].mxu0
        %v746 = vadd.f32 %v568, %v745
        %v747 = vpop.f32.mrb[0].mxu0
        %v748 = vadd.f32 %v570, %v747
        %749 = vmatprep.mubr.f32.mxu0 0.0
        %750 = vmatmul.mubr.f32.gmra.mrb[0].mxu0 %v319
        %v751 = vpop.f32.mrb[0].mxu0
        %v752 = vadd.f32 %v574, %v751
        %v753 = vpop.f32.mrb[0].mxu0
        %v754 = vadd.f32 %v576, %v753
        %755 = vmatprep.mubr.f32.mxu0 0.0
        %756 = vmatmul.mubr.f32.gmra.mrb[0].mxu0 %v320
        %v757 = vpop.f32.mrb[0].mxu0
        %v758 = vadd.f32 %v580, %v757
        %v759 = vpop.f32.mrb[0].mxu0
        %v760 = vadd.f32 %v582, %v759
        %761 = vdwg.mxu0
        %v762 = vld [vmem:[%s4] sm:$0xf]
        %v764 = vlaneseq
        %v765 = vshrl.u32 %v764, 7
        %v766 = vsub.s32 0, %v765
        %v767 = vrot.slane %v762, %v766
        %v768 = vlaneseq
        %v769 = vshrl.u32 %v768, 7
        %v770 = vsub.s32 1, %v769
        %v771 = vrot.slane %v762, %v770
        %v772 = vlaneseq
        %v773 = vshrl.u32 %v772, 7
        %v774 = vsub.s32 2, %v773
        %v775 = vrot.slane %v762, %v774
        %v776 = vlaneseq
        %v777 = vshrl.u32 %v776, 7
        %v778 = vsub.s32 3, %v777
        %v779 = vrot.slane %v762, %v778
        %v784 = vadd.f32 %v651, %v767
        %v785 = vadd.f32 %v653, %v771
        %v786 = vadd.f32 %v740, %v775
        %v787 = vadd.f32 %v742, %v779
        %v788 = vadd.f32 %v657, %v767
        %v789 = vadd.f32 %v659, %v771
        %v790 = vadd.f32 %v746, %v775
        %v791 = vadd.f32 %v748, %v779
        %v792 = vadd.f32 %v663, %v767
        %v793 = vadd.f32 %v665, %v771
        %v794 = vadd.f32 %v752, %v775
        %v795 = vadd.f32 %v754, %v779
        %v796 = vadd.f32 %v669, %v767
        %v797 = vadd.f32 %v671, %v771
        %v798 = vadd.f32 %v758, %v775
        %v799 = vadd.f32 %v760, %v779
        %v800 = vtanh.pop %v784
        %v801 = vtanh.pop %v788
        %v802 = vtanh.pop %v792
        %v803 = vtanh.pop %v796
        %v804 = vtanh.pop %v785
        %v805 = vtanh.pop %v789
        %v806 = vtanh.pop %v793
        %v807 = vtanh.pop %v797
        %v808 = vtanh.pop %v786
        %v809 = vtanh.pop %v790
        %v810 = vtanh.pop %v794
        %v811 = vtanh.pop %v798
        %v812 = vmul.f32 %v317, %v808
        %v813 = vmul.f32 %v318, %v809
        %v814 = vmul.f32 %v319, %v810
        %v815 = vmul.f32 %v320, %v811
        %v816 = vld [vmem:[#allocation7] sm:$0xff]
        %v817 = vld [vmem:[#allocation7 + $0x8] sm:$0xff]
        %v818 = vld [vmem:[#allocation7 + $0x10] sm:$0xff]
        %v819 = vld [vmem:[#allocation7 + $0x18] sm:$0xff]
        %v820 = vld [vmem:[#allocation7 + $0x20] sm:$0xff]
        %v821 = vld [vmem:[#allocation7 + $0x28] sm:$0xff]
        %v822 = vld [vmem:[#allocation7 + $0x30] sm:$0xff]
        %v823 = vld [vmem:[#allocation7 + $0x38] sm:$0xff]
        %v824 = vld [vmem:[#allocation7 + $0x40] sm:$0xff]
        %v825 = vld [vmem:[#allocation7 + $0x48] sm:$0xff]
        %v826 = vld [vmem:[#allocation7 + $0x50] sm:$0xff]
        %v827 = vld [vmem:[#allocation7 + $0x58] sm:$0xff]
        %v828 = vld [vmem:[#allocation7 + $0x60] sm:$0xff]
        %v829 = vld [vmem:[#allocation7 + $0x68] sm:$0xff]
        %v830 = vld [vmem:[#allocation7 + $0x70] sm:$0xff]
        %v831 = vld [vmem:[#allocation7 + $0x78] sm:$0xff]
        %832 = vmatprep.subr.mxu0 0.0
        %833 = vmatpush1.msra.mxu0 %v816
        %834 = vmatprep.subr.mxu0 0.0
        %835 = vmatpush1.msra.mxu0 %v817
        %836 = vmatprep.subr.mxu0 0.0
        %837 = vmatpush1.msra.mxu0 %v818
        %838 = vmatprep.subr.mxu0 0.0
        %839 = vmatpush1.msra.mxu0 %v819
        %840 = vmatprep.subr.mxu0 0.0
        %841 = vmatpush1.msra.mxu0 %v820
        %842 = vmatprep.subr.mxu0 0.0
        %843 = vmatpush1.msra.mxu0 %v821
        %844 = vmatprep.subr.mxu0 0.0
        %845 = vmatpush1.msra.mxu0 %v822
        %846 = vmatprep.subr.mxu0 0.0
        %847 = vmatpush1.msra.mxu0 %v823
        %848 = vmatprep.subr.mxu0 0.0
        %849 = vmatpush1.msra.mxu0 %v824
        %850 = vmatprep.subr.mxu0 0.0
        %851 = vmatpush1.msra.mxu0 %v825
        %852 = vmatprep.subr.mxu0 0.0
        %853 = vmatpush1.msra.mxu0 %v826
        %854 = vmatprep.subr.mxu0 0.0
        %855 = vmatpush1.msra.mxu0 %v827
        %856 = vmatprep.subr.mxu0 0.0
        %857 = vmatpush1.msra.mxu0 %v828
        %858 = vmatprep.subr.mxu0 0.0
        %859 = vmatpush1.msra.mxu0 %v829
        %860 = vmatprep.subr.mxu0 0.0
        %861 = vmatpush1.msra.mxu0 %v830
        %862 = vmatprep.subr.mxu0 0.0
        %863 = vmatpush1.msra.mxu0 %v831
        %864 = vmatprep.subr.mxu0 0.0
        %865 = vmatpush1.msra.mxu0 0.0
        %866 = vmatprep.subr.mxu0 0.0
        %867 = vmatpush1.msra.mxu0 0.0
        %868 = vmatprep.subr.mxu0 0.0
        %869 = vmatpush1.msra.mxu0 0.0
        %870 = vmatprep.subr.mxu0 0.0
        %871 = vmatpush1.msra.mxu0 0.0
        %872 = vmatprep.subr.mxu0 0.0
        %873 = vmatpush1.msra.mxu0 0.0
        %874 = vmatprep.subr.mxu0 0.0
        %875 = vmatpush1.msra.mxu0 0.0
        %876 = vmatprep.subr.mxu0 0.0
        %877 = vmatpush1.msra.mxu0 0.0
        %878 = vmatprep.subr.mxu0 0.0
        %879 = vmatpush1.msra.mxu0 0.0
        %880 = vmatprep.subr.mxu0 0.0
        %881 = vmatpush1.msra.mxu0 0.0
        %882 = vmatprep.subr.mxu0 0.0
        %883 = vmatpush1.msra.mxu0 0.0
        %884 = vmatprep.subr.mxu0 0.0
        %885 = vmatpush1.msra.mxu0 0.0
        %886 = vmatprep.subr.mxu0 0.0
        %887 = vmatpush1.msra.mxu0 0.0
        %888 = vmatprep.subr.mxu0 0.0
        %889 = vmatpush1.msra.mxu0 0.0
        %890 = vmatprep.subr.mxu0 0.0
        %891 = vmatpush1.msra.mxu0 0.0
        %892 = vmatprep.subr.mxu0 0.0
        %893 = vmatpush1.msra.mxu0 0.0
        %894 = vmatprep.subr.mxu0 0.0
        %895 = vmatpush1.msra.mxu0 0.0
        %896 = vmatprep.mubr.f32.mxu0 0.0
        %897 = vmatmul.mubr.f32.gmra.mrb[0].mxu0 %v812
        %v898 = vpop.f32.mrb[0].mxu0
        %v899 = vadd.f32 %v787, %v898
        %v900 = vpop.f32.mrb[0].mxu0
        %901 = vmatprep.mubr.f32.mxu0 0.0
        %902 = vmatmul.mubr.f32.gmra.mrb[0].mxu0 %v813
        %v903 = vpop.f32.mrb[0].mxu0
        %v904 = vadd.f32 %v791, %v903
        %v905 = vpop.f32.mrb[0].mxu0
        %906 = vmatprep.mubr.f32.mxu0 0.0
        %907 = vmatmul.mubr.f32.gmra.mrb[0].mxu0 %v814
        %v908 = vpop.f32.mrb[0].mxu0
        %v909 = vadd.f32 %v795, %v908
        %v910 = vpop.f32.mrb[0].mxu0
        %911 = vmatprep.mubr.f32.mxu0 0.0
        %912 = vmatmul.mubr.f32.gmra.mrb[0].mxu0 %v815
        %v913 = vpop.f32.mrb[0].mxu0
        %v914 = vadd.f32 %v799, %v913
        %v915 = vpop.f32.mrb[0].mxu0
        %916 = vdwg.mxu0
        %v917 = vtanh.pop %v899
        %v918 = vtanh.pop %v904
        %v919 = vtanh.pop %v909
        %v920 = vtanh.pop %v914
        %v921 = vsub.f32 1.0, %v804
        %v922 = vsub.f32 1.0, %v805
        %v923 = vsub.f32 1.0, %v806
        %v924 = vsub.f32 1.0, %v807
        %v925 = vmul.f32 %v921, %v917
        %v926 = vmul.f32 %v922, %v918
        %v927 = vmul.f32 %v923, %v919
        %v928 = vmul.f32 %v924, %v920
        %v929 = vmul.f32 %v317, %v800
        %v930 = vmul.f32 %v318, %v801
        %v931 = vmul.f32 %v319, %v802
        %v932 = vmul.f32 %v320, %v803
        %v933 = vadd.f32 %v925, %v929
        %v934 = vadd.f32 %v926, %v930
        %v935 = vadd.f32 %v927, %v931
        %v936 = vadd.f32 %v928, %v932
        %937 = vst [vmem:[%s303] sm:$0xff] %v933
        %938 = vst [vmem:[%s303 + $0x8] sm:$0xff] %v934
        %939 = vst [vmem:[%s303 + $0x10] sm:$0xff] %v935
        %940 = vst [vmem:[%s303 + $0x18] sm:$0xff] %v936
        %s941 = sand.u32 %s166, 1
        %s942 = scalar_lea.sflag [#allocation4], %s941
        %s943 = sand.u32 %s166, 1
        %s944 = smul.addr %s943, 32
        %s945 = scalar_lea.vmem [#allocation8], %s944
        // Predicated region
        $region57: #{tpu_custom_call.1} parent=43 // pred_check
          %p946 = pneg %p176
        $region58: #{tpu_custom_call.1} parent=43 // pred_check_branch
          %948 = sbr.rel (%p946) target = $region60
        $region59: #{tpu_custom_call.1} parent=43 // pred_region
          %s949 = smul.u32 4, %s22
          %s951 = ssub.s32 512, 512
          %952 = vsyncadd %s942, %s951
          %s953 = smul.addr %s949, 128
          %s954 = scalar_lea.hbm %s6, %s953
          %s955 = sshll.u32 %s945, 4
          %s956 = int_to_ptr.vmem [resolvable:$true] %s955
          %961 = dma.vmem_to_hbm [thread:$0]  %s956, 512, %s954, %s942, 128, 128, 8
        $region60: #{tpu_custom_call.1} parent=43 // pred_fallthru
          _
      $region44: #{tpu_custom_call.1} parent=5 // pred_fallthru
        _
      %p962 = scmp.le.s32.totalorder 2, %s17
      // Predicated region
      $region61: #{tpu_custom_call.1} parent=5 // pred_check
        %p963 = pneg %p962
      $region62: #{tpu_custom_call.1} parent=5 // pred_check_branch
        %965 = sbr.rel (%p963) target = $region64
      $region63: #{tpu_custom_call.1} parent=5 // pred_region
        %s966 = ssub.s32 %s17, 2
        // Predicated region
        $region65: #{tpu_custom_call.1} parent=63 // pred_check
          %p967 = pneg %p182
        $region66: #{tpu_custom_call.1} parent=63 // pred_check_branch
          %969 = sbr.rel (%p967) target = $region68
        $region67: #{tpu_custom_call.1} parent=63 // pred_region
          %s970 = sand.u32 %s167, 1
          %s971 = scalar_lea.sflag [#allocation4], %s970
          %s972 = sand.u32 %s167, 1
          %s973 = smul.addr %s972, 32
          %s974 = scalar_lea.vmem [#allocation8], %s973
          %975 = dma.done %s971, 512
        $region68: #{tpu_custom_call.1} parent=63 // pred_fallthru
          _
      $region64: #{tpu_custom_call.1} parent=5 // pred_fallthru
        _
    $region6: #{tpu_custom_call.1} parent=1 // loop_footer
      %s21 = sadd.s32 1, %s17
    $region7: #{tpu_custom_call.1} parent=1 // loop_footer_branch
      %16 = sbr.rel target = $region3
    $region8: #{tpu_custom_call.1} parent=1 // loop_exit
      _
    %976 = vsyncpa [#allocation3], 1
    %s977 = scalar_lea.sflag [#allocation3], 1
    %978 = vsyncpa %s977, 1
    %979 = vsyncpa [#allocation6], 1
    %980 = vsyncpa [#allocation4], 1
    %s981 = scalar_lea.sflag [#allocation4], 1
    %982 = vsyncpa %s981, 1

</llo_original>
